<compile_context>
chip_gen: v7x
topology: tpu7x:2x2x1
jax: 0.10.0
libtpu: 0.0.40
codegen_flags: <defaults>
</compile_context>

<pallas_src>
import functools

import jax
import jax.numpy as jnp
from jax.experimental import pallas as pl
from jax.experimental.pallas import tpu as pltpu


def _make_pairs(num_features):
    pairs = []
    for i in range(num_features - 1):
        for j in range(i + 1, num_features):
            pairs.append((i, j))
    return tuple(pairs)


def _round_up(x, n):
    return ((x + n - 1) // n) * n


def pnn_kernel(embed_ref, lin_ref, fused_ref, sw1_ref,
               b1_ref, w2_ref, b2_ref, w3row_ref, out_ref,
               *, h1_dim, pd_dim):
    """One batch tile of the PNN forward pass.

    embed_ref : (TB, F*D)            matmul dtype  flattened embeddings
    lin_ref   : (TB, 1)              f32           LinearModel logits (+ final dnn bias)
    fused_ref : (F*D, H1 + 2*P*D)    resident      [zw1 | bigK | selJ] packed column-wise
    sw1_ref   : (P*D, H1)            f32 resident  segment-sum x w1 fold (pair rows)
    b1_ref    : (1, H1), b2_ref (1, H2)            BN folded biases
    w2_ref    : (H1, H2)             resident      BN folded second Linear
    w3row_ref : (1, H2)              resident      final Linear(H2, 1) weights as a row
    out_ref   : (TB, 1)              f32           sigmoid(lin + dnn)
    """
    x = embed_ref[...]                                                   # (TB, F*D)

    # One fused matmul for everything that consumes x directly:
    #   y[:, :H1]            = x @ zw1      (z-part of the first MLP layer, BN folded)
    #   y[:, H1:H1+PD]       = x @ bigK     (x_i K_p, all pairs)
    #   y[:, H1+PD:H1+2*PD]  = x @ selJ     (x_j selected, all pairs)
    y = jnp.dot(x, fused_ref[...], preferred_element_type=jnp.float32)   # (TB, H1+2PD)

    h1 = y[:, :h1_dim] + b1_ref[...]                                     # (TB, H1)
    xi_k = y[:, h1_dim:h1_dim + pd_dim]                                  # (TB, PD)
    x_j = y[:, h1_dim + pd_dim:]                                         # (TB, PD)

    # Bilinear terms stay in f32; sw1 is f32 so the D-lane sums / w1 fold are exact
    # even when the big matmuls run in bf16.
    pair_prod = xi_k * x_j                                               # (TB, PD) f32
    h1 = h1 + jnp.dot(pair_prod, sw1_ref[...],
                      preferred_element_type=jnp.float32)
    h1 = jnp.maximum(h1, 0.0)

    # Second MLP layer (BN folded into w2/b2) + ReLU.
    h2 = jnp.dot(h1.astype(w2_ref.dtype), w2_ref[...],
                 preferred_element_type=jnp.float32) + b2_ref[...]
    h2 = jnp.maximum(h2, 0.0)

    # Final Linear(H2, 1): broadcast multiply + row reduce (avoid N=1 MXU matmul).
    dnn_logits = jnp.sum(h2 * w3row_ref[...], axis=-1, keepdims=True)    # (TB, 1)

    out_ref[...] = jax.nn.sigmoid(lin_ref[...] + dnn_logits)


def pnn_forward(inputs, params, feature_metas, embedding_dim, hidden_units,
                tile_b=2048, matmul_dtype=jnp.float32):
    """inputs: (B, F) int32 category indices.

    tile_b: batch tile (rounded to a multiple of 8).  Default 2048 amortizes the
            ~0.35 us per-grid-step overhead; per-step VMEM here is only a few MiB so
            2048-4096 is safe on v5e/v6e/v7x.  A guard keeps n_tiles >= 2 so the
            batch axis can shard across both TensorCores on v7x.
    matmul_dtype: jnp.bfloat16 recommended on v5e, v6e AND v7x (bf16-native MXUs,
            halves the embed HBM stream); accumulation and all elementwise math
            (bilinear sums, BN-folded biases, sigmoid) stay f32.
    """
    F = len(feature_metas)
    D = embedding_dim
    pairs = _make_pairs(F)
    P = len(pairs)
    H1, H2 = hidden_units
    B = inputs.shape[0]
    eps = 1e-5

    FD, PD = F * D, P * D

    # --- batch tiling (decide first so we can pad the cheap int32 indices, not embed) ---
    b_ceil8 = _round_up(B, 8)
    tb = max(8, min(_round_up(tile_b, 8), b_ceil8))
    # v7x megacore: keep at least 2 grid steps when the batch allows it.
    if b_ceil8 // tb < 2 and b_ceil8 >= 16:
        tb = _round_up((b_ceil8 + 1) // 2, 8)
    b_pad = _round_up(B, tb)
    n_tiles = b_pad // tb

    inputs_pad = inputs
    if b_pad != B:
        inputs_pad = jnp.pad(inputs, ((0, b_pad - B), (0, 0)))           # index 0 is valid

    # --- glue: LinearModel (scalar weight gather, sum, no bias); fold dnn final bias ---
    lin_terms = [params["lin_w"][f][inputs_pad[:, f]] for f in range(F)]
    lin_logits = jnp.sum(jnp.stack(lin_terms, axis=1), axis=1, keepdims=True)
    lin_logits = (lin_logits + params["b3"][None, :]).astype(jnp.float32)  # (b_pad, 1)

    # --- glue: GroupEmbedding gather -> flattened (b_pad, F*D), cast fused with gather ---
    embed = jnp.stack(
        [params["emb"][f][inputs_pad[:, f]].astype(matmul_dtype) for f in range(F)],
        axis=1)
    embed_flat = embed.reshape(b_pad, FD)

    # --- glue: fold eval-mode BatchNorm into the preceding Linear ---
    def fold(w, b, bn):
        gamma, beta, rmean, rvar = bn
        scale = gamma / jnp.sqrt(rvar + eps)
        return w * scale[None, :], (b * scale + beta - rmean * scale)[None, :]

    w1_eff, b1_eff = fold(params["w1"], params["b1"], params["bn1"])     # (F+P, H1)
    w2_eff, b2_eff = fold(params["w2"], params["b2"], params["bn2"])     # (H1, H2)

    # --- glue: fold w1 into the z / pair segment-sum maps (all in f32) ---
    zw1 = jnp.repeat(w1_eff[:F, :], D, axis=0)                           # (FD, H1)
    sw1 = jnp.repeat(w1_eff[F:, :], D, axis=0)                           # (PD, H1)

    # --- glue: pack pair kernels and 0/1 j-selection, fuse with zw1 column-wise ---
    bigk = jnp.zeros((FD, PD), jnp.float32)
    selj = jnp.zeros((FD, PD), jnp.float32)
    eye_d = jnp.eye(D, dtype=jnp.float32)
    for p, (i, j) in enumerate(pairs):
        bigk = bigk.at[i * D:(i + 1) * D, p * D:(p + 1) * D].set(params["op_kernels"][p])
        selj = selj.at[j * D:(j + 1) * D, p * D:(p + 1) * D].set(eye_d)
    fused = jnp.concatenate([zw1, bigk, selj], axis=1).astype(matmul_dtype)  # (FD, H1+2PD)

    sw1 = sw1.astype(jnp.float32)          # keep f32: exact bilinear accumulation
    w2_eff = w2_eff.astype(matmul_dtype)
    b1_eff = b1_eff.astype(jnp.float32)
    b2_eff = b2_eff.astype(jnp.float32)
    w3_row = params["w3"].T.astype(jnp.float32)                          # (1, H2)

    def const(shape):
        return pl.BlockSpec(shape, lambda b: (0,) * len(shape))

    grid_spec = pltpu.PrefetchScalarGridSpec(
        num_scalar_prefetch=0,
        grid=(n_tiles,),
        in_specs=[
            pl.BlockSpec((tb, FD), lambda b: (b, 0)),      # embed tile
            pl.BlockSpec((tb, 1), lambda b: (b, 0)),       # lin tile
            const((FD, H1 + 2 * PD)),                      # fused [zw1|bigK|selJ] (resident)
            const((PD, H1)),                               # sw1 f32 (resident)
            const((1, H1)),                                # b1
            const((H1, H2)),                               # w2 (resident)
            const((1, H2)),                                # b2
            const((1, H2)),                                # w3 row
        ],
        out_specs=pl.BlockSpec((tb, 1), lambda b: (b, 0)),
    )

    itemsize = jnp.dtype(matmul_dtype).itemsize
    flops = b_pad * (2 * FD * (H1 + 2 * PD) + 2 * PD * H1 + 2 * H1 * H2 + 2 * H2)
    weight_bytes = (fused.size * itemsize + sw1.size * 4 + b1_eff.size * 4
                    + w2_eff.size * itemsize + b2_eff.size * 4 + w3_row.size * 4)
    bytes_accessed = b_pad * (FD * itemsize + 4 + 4) + weight_bytes
    cost = pl.CostEstimate(flops=flops, transcendentals=b_pad,
                           bytes_accessed=bytes_accessed)

    # 32 MiB scoped VMEM is plenty for tb <= 4096 here and safe on v7x (64 MiB physical);
    # only raise it for very large tiles (v5e/v6e, 128 MiB physical).
    vmem_limit = 32 * 1024 * 1024 if tb <= 4096 else 64 * 1024 * 1024

    kernel = functools.partial(pnn_kernel, h1_dim=H1, pd_dim=PD)

    out = pl.pallas_call(
        kernel,
        out_shape=jax.ShapeDtypeStruct((b_pad, 1), jnp.float32),
        grid_spec=grid_spec,
        compiler_params=pltpu.CompilerParams(
            dimension_semantics=("parallel",),             # megacore on v7x
            vmem_limit_bytes=vmem_limit,
        ),
        cost_estimate=cost,
    )(embed_flat, lin_logits, fused, sw1, b1_eff, w2_eff, b2_eff, w3_row)
    return out[:B]


def init_params(key, feature_metas, embedding_dim, hidden_units):
    F = len(feature_metas)
    D = embedding_dim
    P = F * (F - 1) // 2
    m = F * (F + 1) // 2
    h1, h2 = hidden_units

    keys = jax.random.split(key, 16)
    params = {}
    params["lin_w"] = [
        0.01 * jax.random.normal(jax.random.fold_in(keys[0], f), (v,), jnp.float32)
        for f, v in enumerate(feature_metas)
    ]
    params["emb"] = [
        jax.random.normal(jax.random.fold_in(keys[1], f), (v, D), jnp.float32)
        for f, v in enumerate(feature_metas)
    ]
    # OuterProduct kernels: normal(mean=0, std=0.001), as in nn.init.normal_
    params["op_kernels"] = 0.001 * jax.random.normal(keys[2], (P, D, D), jnp.float32)

    params["w1"] = jax.random.normal(keys[3], (m, h1), jnp.float32) / jnp.sqrt(m)
    params["b1"] = jnp.zeros((h1,), jnp.float32)
    params["bn1"] = (jnp.ones((h1,), jnp.float32), jnp.zeros((h1,), jnp.float32),
                     jnp.zeros((h1,), jnp.float32), jnp.ones((h1,), jnp.float32))

    params["w2"] = jax.random.normal(keys[4], (h1, h2), jnp.float32) / jnp.sqrt(h1)
    params["b2"] = jnp.zeros((h2,), jnp.float32)
    params["bn2"] = (jnp.ones((h2,), jnp.float32), jnp.zeros((h2,), jnp.float32),
                     jnp.zeros((h2,), jnp.float32), jnp.ones((h2,), jnp.float32))

    params["w3"] = jax.random.normal(keys[5], (h2, 1), jnp.float32) / jnp.sqrt(h2)
    params["b3"] = jnp.zeros((1,), jnp.float32)
    return params


def pnn_reference(inputs, params, feature_metas, embedding_dim, hidden_units):
    """Pure-JAX f32 reference for correctness check."""
    F = len(feature_metas)
    pairs = _make_pairs(F)
    eps = 1e-5
    lin = jnp.sum(jnp.stack([params["lin_w"][f][inputs[:, f]] for f in range(F)], 1),
                  axis=1, keepdims=True)
    x = jnp.stack([params["emb"][f][inputs[:, f]] for f in range(F)], axis=1)
    z = jnp.sum(x, axis=-1)
    outer = []
    for p, (i, j) in enumerate(pairs):
        outer.append(jnp.sum((x[:, i, :] @ params["op_kernels"][p]) * x[:, j, :],
                             axis=-1, keepdims=True))
    prod = jnp.concatenate([z] + outer, axis=1)

    def bn(v, ps):
        g, b, rm, rv = ps
        return (v - rm) / jnp.sqrt(rv + eps) * g + b

    h = jnp.maximum(bn(prod @ params["w1"] + params["b1"], params["bn1"]), 0.0)
    h = jnp.maximum(bn(h @ params["w2"] + params["b2"], params["bn2"]), 0.0)
    dnn = h @ params["w3"] + params["b3"]
    return jax.nn.sigmoid(lin + dnn)


if __name__ == "__main__":
    feature_metas = [10, 20, 30, 15]   # vocab sizes for F=4 categorical features
    embedding_dim = 8
    hidden_units = (128, 64)
    B = 2

    key = jax.random.PRNGKey(0)
    pkey, xkey = jax.random.split(key)
    params = init_params(pkey, feature_metas, embedding_dim, hidden_units)

    maxes = jnp.array(feature_metas, jnp.int32)
    inputs = (jax.random.randint(xkey, (B, len(feature_metas)), 0, 1_000_000)
              % maxes[None, :]).astype(jnp.int32)

    ref = pnn_reference(inputs, params, feature_metas, embedding_dim, hidden_units)

    # f32 matmul path (default): tight check against the f32 reference.
    out = pnn_forward(inputs, params, feature_metas, embedding_dim, hidden_units,
                      matmul_dtype=jnp.float32)
    out = jax.block_until_ready(out)
    assert out.shape == (B, 1), out.shape
    assert jnp.allclose(out, ref, atol=2e-3, rtol=2e-3), (out, ref)

    # bf16 matmul path (recommended on v5e/v6e/v7x): loose check, f32 accumulation inside.
    out_bf16 = pnn_forward(inputs, params, feature_metas, embedding_dim, hidden_units,
                           matmul_dtype=jnp.bfloat16)
    out_bf16 = jax.block_until_ready(out_bf16)
    assert out_bf16.shape == (B, 1), out_bf16.shape
    assert jnp.allclose(out_bf16, ref, atol=5e-2, rtol=5e-2), (out_bf16, ref)

    print("KERNEL_OK")
</pallas_src>

<mosaic_0001>
module attributes {stable_mosaic.version = 11 : i64} {
  func.func @pnn_kernel(%arg0: i32, %arg1: memref<8x32xf32, #tpu.memory_space<vmem>>, %arg2: memref<8x1xf32, #tpu.memory_space<vmem>>, %arg3: memref<32x224xf32, #tpu.memory_space<vmem>>, %arg4: memref<48x128xf32, #tpu.memory_space<vmem>>, %arg5: memref<1x128xf32, #tpu.memory_space<vmem>>, %arg6: memref<128x64xf32, #tpu.memory_space<vmem>>, %arg7: memref<1x64xf32, #tpu.memory_space<vmem>>, %arg8: memref<1x64xf32, #tpu.memory_space<vmem>>, %arg9: memref<8x1xf32, #tpu.memory_space<vmem>>) attributes {dimension_semantics = [#tpu.dimension_semantics<parallel>], iteration_bounds = array<i64: 1>, scalar_prefetch = 0 : i64, scratch_operands = 0 : i64, tpu.core_type = #tpu.core_type<tc>, window_params = [{transform_indices = @transform_0, window_bounds = array<i64: 8, 32>}, {transform_indices = @transform_1, window_bounds = array<i64: 8, 1>}, {pipeline_mode = #tpu.pipeline_mode<synchronous>, transform_indices = @transform_2, window_bounds = array<i64: 32, 224>}, {pipeline_mode = #tpu.pipeline_mode<synchronous>, transform_indices = @transform_3, window_bounds = array<i64: 48, 128>}, {pipeline_mode = #tpu.pipeline_mode<synchronous>, transform_indices = @transform_4, window_bounds = array<i64: 1, 128>}, {pipeline_mode = #tpu.pipeline_mode<synchronous>, transform_indices = @transform_5, window_bounds = array<i64: 128, 64>}, {pipeline_mode = #tpu.pipeline_mode<synchronous>, transform_indices = @transform_6, window_bounds = array<i64: 1, 64>}, {pipeline_mode = #tpu.pipeline_mode<synchronous>, transform_indices = @transform_7, window_bounds = array<i64: 1, 64>}, {transform_indices = @transform_8, window_bounds = array<i64: 8, 1>}]} {
    %c0 = arith.constant 0 : index
    %c0_0 = arith.constant 0 : index
    %0 = vector.load %arg1[%c0, %c0_0] : memref<8x32xf32, #tpu.memory_space<vmem>>, vector<8x32xf32>
    %c0_1 = arith.constant 0 : index
    %c0_2 = arith.constant 0 : index
    %1 = vector.load %arg3[%c0_1, %c0_2] : memref<32x224xf32, #tpu.memory_space<vmem>>, vector<32x224xf32>
    %cst = arith.constant dense<0.000000e+00> : vector<8x224xf32>
    %2 = tpu.matmul %0, %1, %cst {dimension_numbers = #tpu.dot_dimension_numbers<[1], [0], [0], [1], [0, 0, 1, 1], [], []>} : vector<8x32xf32>, vector<32x224xf32>, vector<8x224xf32> -> vector<8x224xf32>
    %3 = vector.extract_strided_slice %2 {offsets = [0, 0], sizes = [8, 128], strides = [1, 1]} : vector<8x224xf32> to vector<8x128xf32>
    %c0_3 = arith.constant 0 : index
    %c0_4 = arith.constant 0 : index
    %4 = vector.load %arg5[%c0_3, %c0_4] : memref<1x128xf32, #tpu.memory_space<vmem>>, vector<1x128xf32>
    %5 = vector.broadcast %4 : vector<1x128xf32> to vector<8x128xf32>
    %6 = arith.addf %3, %5 : vector<8x128xf32>
    %7 = vector.extract_strided_slice %2 {offsets = [0, 128], sizes = [8, 48], strides = [1, 1]} : vector<8x224xf32> to vector<8x48xf32>
    %8 = vector.extract_strided_slice %2 {offsets = [0, 176], sizes = [8, 48], strides = [1, 1]} : vector<8x224xf32> to vector<8x48xf32>
    %9 = arith.mulf %7, %8 : vector<8x48xf32>
    %c0_5 = arith.constant 0 : index
    %c0_6 = arith.constant 0 : index
    %10 = vector.load %arg4[%c0_5, %c0_6] : memref<48x128xf32, #tpu.memory_space<vmem>>, vector<48x128xf32>
    %cst_7 = arith.constant dense<0.000000e+00> : vector<8x128xf32>
    %11 = tpu.matmul %9, %10, %cst_7 {dimension_numbers = #tpu.dot_dimension_numbers<[1], [0], [0], [1], [0, 0, 1, 1], [], []>} : vector<8x48xf32>, vector<48x128xf32>, vector<8x128xf32> -> vector<8x128xf32>
    %12 = arith.addf %6, %11 : vector<8x128xf32>
    %cst_8 = arith.constant 0.000000e+00 : f32
    %13 = vector.broadcast %cst_8 : f32 to vector<8x128xf32>
    %14 = arith.maximumf %12, %13 : vector<8x128xf32>
    %c0_9 = arith.constant 0 : index
    %c0_10 = arith.constant 0 : index
    %15 = vector.load %arg6[%c0_9, %c0_10] : memref<128x64xf32, #tpu.memory_space<vmem>>, vector<128x64xf32>
    %cst_11 = arith.constant dense<0.000000e+00> : vector<8x64xf32>
    %16 = tpu.matmul %14, %15, %cst_11 {dimension_numbers = #tpu.dot_dimension_numbers<[1], [0], [0], [1], [0, 0, 1, 1], [], []>} : vector<8x128xf32>, vector<128x64xf32>, vector<8x64xf32> -> vector<8x64xf32>
    %c0_12 = arith.constant 0 : index
    %c0_13 = arith.constant 0 : index
    %17 = vector.load %arg7[%c0_12, %c0_13] : memref<1x64xf32, #tpu.memory_space<vmem>>, vector<1x64xf32>
    %18 = vector.broadcast %17 : vector<1x64xf32> to vector<8x64xf32>
    %19 = arith.addf %16, %18 : vector<8x64xf32>
    %cst_14 = arith.constant 0.000000e+00 : f32
    %20 = vector.broadcast %cst_14 : f32 to vector<8x64xf32>
    %21 = arith.maximumf %19, %20 : vector<8x64xf32>
    %c0_15 = arith.constant 0 : index
    %c0_16 = arith.constant 0 : index
    %22 = vector.load %arg8[%c0_15, %c0_16] : memref<1x64xf32, #tpu.memory_space<vmem>>, vector<1x64xf32>
    %23 = vector.broadcast %22 : vector<1x64xf32> to vector<8x64xf32>
    %24 = arith.mulf %21, %23 : vector<8x64xf32>
    %cst_17 = arith.constant dense<0.000000e+00> : vector<8xf32>
    %25 = vector.multi_reduction <add>, %24, %cst_17 [1] : vector<8x64xf32> to vector<8xf32>
    %26 = vector.shape_cast %25 : vector<8xf32> to vector<8x1xf32>
    %c0_18 = arith.constant 0 : index
    %c0_19 = arith.constant 0 : index
    %27 = vector.load %arg2[%c0_18, %c0_19] : memref<8x1xf32, #tpu.memory_space<vmem>>, vector<8x1xf32>
    %28 = arith.addf %27, %26 : vector<8x1xf32>
    %29 = arith.negf %28 : vector<8x1xf32>
    %30 = math.exp %29 : vector<8x1xf32>
    %cst_20 = arith.constant 1.000000e+00 : f32
    %31 = vector.broadcast %cst_20 : f32 to vector<8x1xf32>
    %32 = arith.addf %31, %30 : vector<8x1xf32>
    %33 = arith.divf %31, %32 : vector<8x1xf32>
    %c0_21 = arith.constant 0 : index
    %c0_22 = arith.constant 0 : index
    %34 = vector.load %arg9[%c0_21, %c0_22] : memref<8x1xf32, #tpu.memory_space<vmem>>, vector<8x1xf32>
    tpu.vector_store %arg9[%c0_21, %c0_22], %33 {strides = array<i32>} : memref<8x1xf32, #tpu.memory_space<vmem>>, vector<8x1xf32>,
    return
  }
  func.func @transform_0(%arg0: i32) -> (i32, i32) {
    %c0_i32 = arith.constant 0 : i32
    %c0_i32_0 = arith.constant 0 : i32
    return %arg0, %c0_i32 : i32, i32
  }
  func.func @transform_1(%arg0: i32) -> (i32, i32) {
    %c0_i32 = arith.constant 0 : i32
    %c0_i32_0 = arith.constant 0 : i32
    return %arg0, %c0_i32 : i32, i32
  }
  func.func @transform_2(%arg0: i32) -> (i32, i32) {
    %c0_i32 = arith.constant 0 : i32
    %c0_i32_0 = arith.constant 0 : i32
    %c0_i32_1 = arith.constant 0 : i32
    return %c0_i32, %c0_i32_0 : i32, i32
  }
  func.func @transform_3(%arg0: i32) -> (i32, i32) {
    %c0_i32 = arith.constant 0 : i32
    %c0_i32_0 = arith.constant 0 : i32
    %c0_i32_1 = arith.constant 0 : i32
    return %c0_i32, %c0_i32_0 : i32, i32
  }
  func.func @transform_4(%arg0: i32) -> (i32, i32) {
    %c0_i32 = arith.constant 0 : i32
    %c0_i32_0 = arith.constant 0 : i32
    %c0_i32_1 = arith.constant 0 : i32
    return %c0_i32, %c0_i32_0 : i32, i32
  }
  func.func @transform_5(%arg0: i32) -> (i32, i32) {
    %c0_i32 = arith.constant 0 : i32
    %c0_i32_0 = arith.constant 0 : i32
    %c0_i32_1 = arith.constant 0 : i32
    return %c0_i32, %c0_i32_0 : i32, i32
  }
  func.func @transform_6(%arg0: i32) -> (i32, i32) {
    %c0_i32 = arith.constant 0 : i32
    %c0_i32_0 = arith.constant 0 : i32
    %c0_i32_1 = arith.constant 0 : i32
    return %c0_i32, %c0_i32_0 : i32, i32
  }
  func.func @transform_7(%arg0: i32) -> (i32, i32) {
    %c0_i32 = arith.constant 0 : i32
    %c0_i32_0 = arith.constant 0 : i32
    %c0_i32_1 = arith.constant 0 : i32
    return %c0_i32, %c0_i32_0 : i32, i32
  }
  func.func @transform_8(%arg0: i32) -> (i32, i32) {
    %c0_i32 = arith.constant 0 : i32
    %c0_i32_0 = arith.constant 0 : i32
    return %arg0, %c0_i32 : i32, i32
  }
}

</mosaic_0001>

<llo_original>
// kernel: tpu_custom_call.1
$region0: #{tpu_custom_call.1}
  #allocation0 [shape = 'u32[]', space=smem, size = 0x4, offset = 0x4, fixed_abs, tag = 'smem constant byte address 0x4 - core index']
  #allocation1 [shape = 'u32[144,128]{1,0:T(1,128)}', space=vmem, size = 0x12000, scoped, tag = 'internal scratch']
  %s0 = inlined_call_operand.vmem [shape: f32[8,32], index: 0, kind: input, shape index: {}]
  %s1 = inlined_call_operand.vmem [shape: f32[8,1], index: 1, kind: input, shape index: {}]
  %s2 = inlined_call_operand.vmem [shape: f32[32,224], index: 2, kind: input, shape index: {}]
  %s3 = inlined_call_operand.vmem [shape: f32[48,128], index: 3, kind: input, shape index: {}]
  %s4 = inlined_call_operand.vmem [shape: f32[1,128], index: 4, kind: input, shape index: {}]
  %s5 = inlined_call_operand.vmem [shape: f32[128,64], index: 5, kind: input, shape index: {}]
  %s6 = inlined_call_operand.vmem [shape: f32[1,64], index: 6, kind: input, shape index: {}]
  %s7 = inlined_call_operand.vmem [shape: f32[1,64], index: 7, kind: input, shape index: {}]
  %s8 = inlined_call_operand.vmem [shape: f32[8,1], index: 8, kind: output, shape index: {}]
  %s9 = sld [smem:[#allocation0]]
  $region42: #{tpu_custom_call.1} parent=0
    _
  %s11 = ssub.s32 1, %s9
  %s12 = scalar_select 0, %s11, %s9
  // Predicated region
  $region2: #{tpu_custom_call.1} parent=0 // pred_check
    _
  $region3: #{tpu_custom_call.1} parent=0 // pred_check_branch
    %14 = sbr.rel (0) target = $region5
  $region4: #{tpu_custom_call.1} parent=0 // pred_region
    _
  $region5: #{tpu_custom_call.1} parent=0 // pred_fallthru
    _
  // Predicated region
  $region6: #{tpu_custom_call.1} parent=0 // pred_check
    _
  $region7: #{tpu_custom_call.1} parent=0 // pred_check_branch
    %16 = sbr.rel (0) target = $region9
  $region8: #{tpu_custom_call.1} parent=0 // pred_region
    _
  $region9: #{tpu_custom_call.1} parent=0 // pred_fallthru
    _
  // Predicated region
  $region10: #{tpu_custom_call.1} parent=0 // pred_check
    _
  $region11: #{tpu_custom_call.1} parent=0 // pred_check_branch
    %18 = sbr.rel (0) target = $region13
  $region12: #{tpu_custom_call.1} parent=0 // pred_region
    _
  $region13: #{tpu_custom_call.1} parent=0 // pred_fallthru
    _
  // Predicated region
  $region14: #{tpu_custom_call.1} parent=0 // pred_check
    _
  $region15: #{tpu_custom_call.1} parent=0 // pred_check_branch
    %20 = sbr.rel (0) target = $region17
  $region16: #{tpu_custom_call.1} parent=0 // pred_region
    _
  $region17: #{tpu_custom_call.1} parent=0 // pred_fallthru
    _
  // Predicated region
  $region18: #{tpu_custom_call.1} parent=0 // pred_check
    _
  $region19: #{tpu_custom_call.1} parent=0 // pred_check_branch
    %22 = sbr.rel (0) target = $region21
  $region20: #{tpu_custom_call.1} parent=0 // pred_region
    _
  $region21: #{tpu_custom_call.1} parent=0 // pred_fallthru
    _
  // Predicated region
  $region22: #{tpu_custom_call.1} parent=0 // pred_check
    _
  $region23: #{tpu_custom_call.1} parent=0 // pred_check_branch
    %24 = sbr.rel (0) target = $region25
  $region24: #{tpu_custom_call.1} parent=0 // pred_region
    _
  $region25: #{tpu_custom_call.1} parent=0 // pred_fallthru
    _
  // Predicated region
  $region26: #{tpu_custom_call.1} parent=0 // pred_check
    _
  $region27: #{tpu_custom_call.1} parent=0 // pred_check_branch
    %26 = sbr.rel (0) target = $region29
  $region28: #{tpu_custom_call.1} parent=0 // pred_region
    _
  $region29: #{tpu_custom_call.1} parent=0 // pred_fallthru
    _
  // Predicated region
  $region30: #{tpu_custom_call.1} parent=0 // pred_check
    _
  $region31: #{tpu_custom_call.1} parent=0 // pred_check_branch
    %28 = sbr.rel (0) target = $region33
  $region32: #{tpu_custom_call.1} parent=0 // pred_region
    _
  $region33: #{tpu_custom_call.1} parent=0 // pred_fallthru
    _
  %v29 = vld [vmem:[%s0] sm:$0xff]
  %v30 = vld [vmem:[%s2] sm:$0xff]
  %v31 = vld [vmem:[%s2 + $0x8] sm:$0xff]
  %v32 = vld [vmem:[%s2 + $0x10] sm:$0xff]
  %v33 = vld [vmem:[%s2 + $0x18] sm:$0xff]
  %v34 = vld [vmem:[%s2 + $0x20] sm:$0xff]
  %v35 = vld [vmem:[%s2 + $0x28] sm:$0xff]
  %v36 = vld [vmem:[%s2 + $0x30] sm:$0xff]
  %v37 = vld [vmem:[%s2 + $0x38] sm:$0xff]
  %vm38 = vcmask 261120
  %v40 = vsel %vm38, %v29, 0
  %42 = vmatprep.subr.mxu0 %v31
  %43 = vmatpush1.msra.mxu0 %v30
  %44 = vmatprep.subr.mxu0 %v33
  %45 = vmatpush1.msra.mxu0 %v32
  %46 = vmatprep.subr.mxu0 %v35
  %47 = vmatpush1.msra.mxu0 %v34
  %48 = vmatprep.subr.mxu0 %v37
  %49 = vmatpush1.msra.mxu0 %v36
  %50 = vmatprep.subr.mxu0 0.0
  %51 = vmatpush1.msra.mxu0 0.0
  %52 = vmatprep.subr.mxu0 0.0
  %53 = vmatpush1.msra.mxu0 0.0
  %54 = vmatprep.subr.mxu0 0.0
  %55 = vmatpush1.msra.mxu0 0.0
  %56 = vmatprep.subr.mxu0 0.0
  %57 = vmatpush1.msra.mxu0 0.0
  %58 = vmatprep.subr.mxu0 0.0
  %59 = vmatpush1.msra.mxu0 0.0
  %60 = vmatprep.subr.mxu0 0.0
  %61 = vmatpush1.msra.mxu0 0.0
  %62 = vmatprep.subr.mxu0 0.0
  %63 = vmatpush1.msra.mxu0 0.0
  %64 = vmatprep.subr.mxu0 0.0
  %65 = vmatpush1.msra.mxu0 0.0
  %66 = vmatprep.subr.mxu0 0.0
  %67 = vmatpush1.msra.mxu0 0.0
  %68 = vmatprep.subr.mxu0 0.0
  %69 = vmatpush1.msra.mxu0 0.0
  %70 = vmatprep.subr.mxu0 0.0
  %71 = vmatpush1.msra.mxu0 0.0
  %72 = vmatprep.subr.mxu0 0.0
  %73 = vmatpush1.msra.mxu0 0.0
  %74 = vmatprep.subr.mxu0 0.0
  %75 = vmatpush1.msra.mxu0 0.0
  %76 = vmatprep.subr.mxu0 0.0
  %77 = vmatpush1.msra.mxu0 0.0
  %78 = vmatprep.subr.mxu0 0.0
  %79 = vmatpush1.msra.mxu0 0.0
  %80 = vmatprep.subr.mxu0 0.0
  %81 = vmatpush1.msra.mxu0 0.0
  %82 = vmatprep.subr.mxu0 0.0
  %83 = vmatpush1.msra.mxu0 0.0
  %84 = vmatprep.subr.mxu0 0.0
  %85 = vmatpush1.msra.mxu0 0.0
  %86 = vmatprep.subr.mxu0 0.0
  %87 = vmatpush1.msra.mxu0 0.0
  %88 = vmatprep.subr.mxu0 0.0
  %89 = vmatpush1.msra.mxu0 0.0
  %90 = vmatprep.subr.mxu0 0.0
  %91 = vmatpush1.msra.mxu0 0.0
  %92 = vmatprep.subr.mxu0 0.0
  %93 = vmatpush1.msra.mxu0 0.0
  %94 = vmatprep.subr.mxu0 0.0
  %95 = vmatpush1.msra.mxu0 0.0
  %96 = vmatprep.subr.mxu0 0.0
  %97 = vmatpush1.msra.mxu0 0.0
  %98 = vmatprep.subr.mxu0 0.0
  %99 = vmatpush1.msra.mxu0 0.0
  %100 = vmatprep.subr.mxu0 0.0
  %101 = vmatpush1.msra.mxu0 0.0
  %102 = vmatprep.subr.mxu0 0.0
  %103 = vmatpush1.msra.mxu0 0.0
  %104 = vmatprep.subr.mxu0 0.0
  %105 = vmatpush1.msra.mxu0 0.0
  %106 = vmatprep.mubr.f32.mxu0 0.0
  %107 = vmatmul.mubr.f32.gmra.mrb[0].mxu0 %v40
  %v108 = vpop.f32.mrb[0].mxu0
  %v109 = vadd.f32 0.0, %v108
  %v110 = vpop.f32.mrb[0].mxu0
  %v111 = vadd.f32 0.0, %v110
  %112 = vdwg.mxu0
  %v113 = vld [vmem:[%s4] sm:$0x1]
  %v115 = vlaneseq
  %v116 = vshrl.u32 %v115, 7
  %v117 = vsub.s32 0, %v116
  %v118 = vrot.slane %v113, %v117
  %v120 = vadd.f32 %v109, %v118
  %122 = vrot.lane.b32.xlu0 %v111, 80
  %v123 = vpop.permute.xlu0 %122
  %v125 = vmul.f32 %v111, %v123
  %v126 = vld [vmem:[%s3] sm:$0xff]
  %v127 = vld [vmem:[%s3 + $0x8] sm:$0xff]
  %v128 = vld [vmem:[%s3 + $0x10] sm:$0xff]
  %v129 = vld [vmem:[%s3 + $0x18] sm:$0xff]
  %v130 = vld [vmem:[%s3 + $0x20] sm:$0xff]
  %v131 = vld [vmem:[%s3 + $0x28] sm:$0xff]
  %vm132 = vcmask 392192
  %v134 = vsel %vm132, %v125, 0
  %136 = vmatprep.subr.mxu0 0.0
  %137 = vmatpush1.msra.mxu0 %v126
  %138 = vmatprep.subr.mxu0 0.0
  %139 = vmatpush1.msra.mxu0 %v127
  %140 = vmatprep.subr.mxu0 0.0
  %141 = vmatpush1.msra.mxu0 %v128
  %142 = vmatprep.subr.mxu0 0.0
  %143 = vmatpush1.msra.mxu0 %v129
  %144 = vmatprep.subr.mxu0 0.0
  %145 = vmatpush1.msra.mxu0 %v130
  %146 = vmatprep.subr.mxu0 0.0
  %147 = vmatpush1.msra.mxu0 %v131
  %148 = vmatprep.subr.mxu0 0.0
  %149 = vmatpush1.msra.mxu0 0.0
  %150 = vmatprep.subr.mxu0 0.0
  %151 = vmatpush1.msra.mxu0 0.0
  %152 = vmatprep.subr.mxu0 0.0
  %153 = vmatpush1.msra.mxu0 0.0
  %154 = vmatprep.subr.mxu0 0.0
  %155 = vmatpush1.msra.mxu0 0.0
  %156 = vmatprep.subr.mxu0 0.0
  %157 = vmatpush1.msra.mxu0 0.0
  %158 = vmatprep.subr.mxu0 0.0
  %159 = vmatpush1.msra.mxu0 0.0
  %160 = vmatprep.subr.mxu0 0.0
  %161 = vmatpush1.msra.mxu0 0.0
  %162 = vmatprep.subr.mxu0 0.0
  %163 = vmatpush1.msra.mxu0 0.0
  %164 = vmatprep.subr.mxu0 0.0
  %165 = vmatpush1.msra.mxu0 0.0
  %166 = vmatprep.subr.mxu0 0.0
  %167 = vmatpush1.msra.mxu0 0.0
  %168 = vmatprep.subr.mxu0 0.0
  %169 = vmatpush1.msra.mxu0 0.0
  %170 = vmatprep.subr.mxu0 0.0
  %171 = vmatpush1.msra.mxu0 0.0
  %172 = vmatprep.subr.mxu0 0.0
  %173 = vmatpush1.msra.mxu0 0.0
  %174 = vmatprep.subr.mxu0 0.0
  %175 = vmatpush1.msra.mxu0 0.0
  %176 = vmatprep.subr.mxu0 0.0
  %177 = vmatpush1.msra.mxu0 0.0
  %178 = vmatprep.subr.mxu0 0.0
  %179 = vmatpush1.msra.mxu0 0.0
  %180 = vmatprep.subr.mxu0 0.0
  %181 = vmatpush1.msra.mxu0 0.0
  %182 = vmatprep.subr.mxu0 0.0
  %183 = vmatpush1.msra.mxu0 0.0
  %184 = vmatprep.subr.mxu0 0.0
  %185 = vmatpush1.msra.mxu0 0.0
  %186 = vmatprep.subr.mxu0 0.0
  %187 = vmatpush1.msra.mxu0 0.0
  %188 = vmatprep.subr.mxu0 0.0
  %189 = vmatpush1.msra.mxu0 0.0
  %190 = vmatprep.subr.mxu0 0.0
  %191 = vmatpush1.msra.mxu0 0.0
  %192 = vmatprep.subr.mxu0 0.0
  %193 = vmatpush1.msra.mxu0 0.0
  %194 = vmatprep.subr.mxu0 0.0
  %195 = vmatpush1.msra.mxu0 0.0
  %196 = vmatprep.subr.mxu0 0.0
  %197 = vmatpush1.msra.mxu0 0.0
  %198 = vmatprep.subr.mxu0 0.0
  %199 = vmatpush1.msra.mxu0 0.0
  %200 = vmatprep.mubr.f32.mxu0 0.0
  %201 = vmatmul.mubr.f32.gmra.mrb[0].mxu0 %v134
  %v202 = vpop.f32.mrb[0].mxu0
  %v203 = vadd.f32 0.0, %v202
  %v204 = vpop.f32.mrb[0].mxu0
  %205 = vdwg.mxu0
  %v206 = vadd.f32 %v120, %v203
  %v207 = vmax.f32 %v206, 0.0
  %v208 = vld [vmem:[%s5] sm:$0xff]
  %v209 = vld [vmem:[%s5 + $0x8] sm:$0xff]
  %v210 = vld [vmem:[%s5 + $0x10] sm:$0xff]
  %v211 = vld [vmem:[%s5 + $0x18] sm:$0xff]
  %v212 = vld [vmem:[%s5 + $0x20] sm:$0xff]
  %v213 = vld [vmem:[%s5 + $0x28] sm:$0xff]
  %v214 = vld [vmem:[%s5 + $0x30] sm:$0xff]
  %v215 = vld [vmem:[%s5 + $0x38] sm:$0xff]
  %v216 = vld [vmem:[%s5 + $0x40] sm:$0xff]
  %v217 = vld [vmem:[%s5 + $0x48] sm:$0xff]
  %v218 = vld [vmem:[%s5 + $0x50] sm:$0xff]
  %v219 = vld [vmem:[%s5 + $0x58] sm:$0xff]
  %v220 = vld [vmem:[%s5 + $0x60] sm:$0xff]
  %v221 = vld [vmem:[%s5 + $0x68] sm:$0xff]
  %v222 = vld [vmem:[%s5 + $0x70] sm:$0xff]
  %v223 = vld [vmem:[%s5 + $0x78] sm:$0xff]
  %v224 = vld [vmem:[%s6] sm:$0x1]
  %v226 = vlaneseq
  %v227 = vshrl.u32 %v226, 7
  %v228 = vsub.s32 0, %v227
  %v229 = vrot.slane %v224, %v228
  %231 = vmatprep.subr.mxu0 0.0
  %232 = vmatpush1.msra.mxu0 %v208
  %233 = vmatprep.subr.mxu0 0.0
  %234 = vmatpush1.msra.mxu0 %v209
  %235 = vmatprep.subr.mxu0 0.0
  %236 = vmatpush1.msra.mxu0 %v210
  %237 = vmatprep.subr.mxu0 0.0
  %238 = vmatpush1.msra.mxu0 %v211
  %239 = vmatprep.subr.mxu0 0.0
  %240 = vmatpush1.msra.mxu0 %v212
  %241 = vmatprep.subr.mxu0 0.0
  %242 = vmatpush1.msra.mxu0 %v213
  %243 = vmatprep.subr.mxu0 0.0
  %244 = vmatpush1.msra.mxu0 %v214
  %245 = vmatprep.subr.mxu0 0.0
  %246 = vmatpush1.msra.mxu0 %v215
  %247 = vmatprep.subr.mxu0 0.0
  %248 = vmatpush1.msra.mxu0 %v216
  %249 = vmatprep.subr.mxu0 0.0
  %250 = vmatpush1.msra.mxu0 %v217
  %251 = vmatprep.subr.mxu0 0.0
  %252 = vmatpush1.msra.mxu0 %v218
  %253 = vmatprep.subr.mxu0 0.0
  %254 = vmatpush1.msra.mxu0 %v219
  %255 = vmatprep.subr.mxu0 0.0
  %256 = vmatpush1.msra.mxu0 %v220
  %257 = vmatprep.subr.mxu0 0.0
  %258 = vmatpush1.msra.mxu0 %v221
  %259 = vmatprep.subr.mxu0 0.0
  %260 = vmatpush1.msra.mxu0 %v222
  %261 = vmatprep.subr.mxu0 0.0
  %262 = vmatpush1.msra.mxu0 %v223
  %263 = vmatprep.subr.mxu0 0.0
  %264 = vmatpush1.msra.mxu0 0.0
  %265 = vmatprep.subr.mxu0 0.0
  %266 = vmatpush1.msra.mxu0 0.0
  %267 = vmatprep.subr.mxu0 0.0
  %268 = vmatpush1.msra.mxu0 0.0
  %269 = vmatprep.subr.mxu0 0.0
  %270 = vmatpush1.msra.mxu0 0.0
  %271 = vmatprep.subr.mxu0 0.0
  %272 = vmatpush1.msra.mxu0 0.0
  %273 = vmatprep.subr.mxu0 0.0
  %274 = vmatpush1.msra.mxu0 0.0
  %275 = vmatprep.subr.mxu0 0.0
  %276 = vmatpush1.msra.mxu0 0.0
  %277 = vmatprep.subr.mxu0 0.0
  %278 = vmatpush1.msra.mxu0 0.0
  %279 = vmatprep.subr.mxu0 0.0
  %280 = vmatpush1.msra.mxu0 0.0
  %281 = vmatprep.subr.mxu0 0.0
  %282 = vmatpush1.msra.mxu0 0.0
  %283 = vmatprep.subr.mxu0 0.0
  %284 = vmatpush1.msra.mxu0 0.0
  %285 = vmatprep.subr.mxu0 0.0
  %286 = vmatpush1.msra.mxu0 0.0
  %287 = vmatprep.subr.mxu0 0.0
  %288 = vmatpush1.msra.mxu0 0.0
  %289 = vmatprep.subr.mxu0 0.0
  %290 = vmatpush1.msra.mxu0 0.0
  %291 = vmatprep.subr.mxu0 0.0
  %292 = vmatpush1.msra.mxu0 0.0
  %293 = vmatprep.subr.mxu0 0.0
  %294 = vmatpush1.msra.mxu0 0.0
  %295 = vmatprep.mubr.f32.mxu0 0.0
  %296 = vmatmul.mubr.f32.gmra.mrb[0].mxu0 %v207
  %v297 = vpop.f32.mrb[0].mxu0
  %v298 = vadd.f32 %v229, %v297
  %v299 = vpop.f32.mrb[0].mxu0
  %300 = vdwg.mxu0
  %v301 = vmax.f32 %v298, 0.0
  %v302 = vld [vmem:[%s7] sm:$0x1]
  %v304 = vlaneseq
  %v305 = vshrl.u32 %v304, 7
  %v306 = vsub.s32 0, %v305
  %v307 = vrot.slane %v302, %v306
  %v309 = vmul.f32 %v301, %v307
  %vm310 = vcmask 523264
  %v311 = vsel %vm310, %v309, 0.0
  %312 = vadd.xlane.f32.xlu0 %v311
  %v313 = vpop.xlane.xlu0 %312
  %v314 = vld [vmem:[%s1] sm:$0xff]
  %v315 = vadd.f32 %v314, %v313
  %v316 = vxor.u32 %v315, 2147483648
  %v317 = vmul.f32 %v316, 1.442695
  %v318 = vpow.pop %v317
  %v319 = vadd.f32 %v318, 1.0
  %v320 = vrcp.pop %v319
  %v321 = vmul.f32 1.0, %v320
  %vm322 = vcmask 7168
  %323 = vst.msk [vmem:[%s8] sm:$0xff] %vm322, %v321
  // Predicated region
  $region34: #{tpu_custom_call.1} parent=0 // pred_check
    _
  $region35: #{tpu_custom_call.1} parent=0 // pred_check_branch
    %325 = sbr.rel (0) target = $region37
  $region36: #{tpu_custom_call.1} parent=0 // pred_region
    _
  $region37: #{tpu_custom_call.1} parent=0 // pred_fallthru
    _
  // Predicated region
  $region38: #{tpu_custom_call.1} parent=0 // pred_check
    _
  $region39: #{tpu_custom_call.1} parent=0 // pred_check_branch
    %327 = sbr.rel (0) target = $region41
  $region40: #{tpu_custom_call.1} parent=0 // pred_region
    _
  $region41: #{tpu_custom_call.1} parent=0 // pred_fallthru
    _

</llo_original>
